<compile_context>
chip_gen: v7x
topology: tpu7x:2x2x1
jax: 0.10.0
libtpu: 0.0.40
codegen_flags: <defaults>
</compile_context>

<pallas_src>
import jax
import jax.numpy as jnp
from jax.experimental import pallas as pl
from jax.experimental.pallas import tpu as pltpu


def _multifusion_kernel(w_ref, x0_ref, x1_ref, x2_ref, x3_ref, o_ref):
    # --- softmax over the 4 scalar weights (scalar path, SMEM) ---
    w0 = w_ref[0]
    w1 = w_ref[1]
    w2 = w_ref[2]
    w3 = w_ref[3]
    m = jnp.maximum(jnp.maximum(w0, w1), jnp.maximum(w2, w3))
    e0 = jnp.exp(w0 - m)
    e1 = jnp.exp(w1 - m)
    e2 = jnp.exp(w2 - m)
    e3 = jnp.exp(w3 - m)
    inv = 1.0 / (e0 + e1 + e2 + e3)
    s0 = e0 * inv
    s1 = e1 * inv
    s2 = e2 * inv
    s3 = e3 * inv

    # --- weighted elementwise fusion (VPU hot path, f32 accumulation) ---
    x0 = x0_ref[...].astype(jnp.float32)
    x1 = x1_ref[...].astype(jnp.float32)
    x2 = x2_ref[...].astype(jnp.float32)
    x3 = x3_ref[...].astype(jnp.float32)
    fused = x0 * s0 + x1 * s1 + x2 * s2 + x3 * s3
    o_ref[...] = fused.astype(o_ref.dtype)


def _choose_layout(n_elems, itemsize):
    """Pick a lane-dense (rows, lane) layout and a row-tile size."""
    # Pad total element count up to a multiple of 128 lanes.
    n_pad = ((n_elems + 127) // 128) * 128
    lane = 128
    for cand in (4096, 2048, 1024, 512, 256, 128):
        if n_pad % cand == 0:
            lane = cand
            break
    rows = n_pad // lane

    # Row tile: ~2 MiB per tile => 5 arrays x 2 buffers ~= 20 MiB of VMEM,
    # comfortably inside the 40 MiB limit we request (and v7x's 64 MiB VMEM).
    budget_rows = max(8, (2 * 1024 * 1024) // (lane * max(itemsize, 4)))
    tr = min(rows, budget_rows)
    if tr < rows:
        tr = max(8, (tr // 8) * 8)  # (8,128) sublane constraint for tiled blocks
    return n_pad, lane, rows, tr


def multifusion(weights, out_list):
    """weights: (4,) float32; out_list: list of 4 equal-shape NCHW arrays."""
    x0, x1, x2, x3 = out_list
    orig_shape = x0.shape
    dtype = x0.dtype
    n = x0.size
    itemsize = jnp.dtype(dtype).itemsize

    n_pad, lane, rows, tr = _choose_layout(n, itemsize)

    def flat(x):
        xf = x.reshape(-1)
        if n_pad != n:
            xf = jnp.pad(xf, (0, n_pad - n))
        return xf.reshape(rows, lane)

    x0f, x1f, x2f, x3f = flat(x0), flat(x1), flat(x2), flat(x3)

    grid = (pl.cdiv(rows, tr),)
    tile_spec = lambda: pl.BlockSpec((tr, lane), lambda i: (i, 0))

    out = pl.pallas_call(
        _multifusion_kernel,
        out_shape=jax.ShapeDtypeStruct((rows, lane), dtype),
        grid_spec=pltpu.PrefetchScalarGridSpec(
            num_scalar_prefetch=0,
            grid=grid,
            in_specs=[
                pl.BlockSpec(memory_space=pltpu.SMEM),  # (4,) fusion scalars
                tile_spec(),
                tile_spec(),
                tile_spec(),
                tile_spec(),
            ],
            out_specs=tile_spec(),
        ),
        compiler_params=pltpu.CompilerParams(
            dimension_semantics=("parallel",),   # disjoint output tiles per step
            vmem_limit_bytes=40 << 20,           # headroom for 10 live tile buffers
        ),
    )(weights, x0f, x1f, x2f, x3f)

    out = out.reshape(-1)
    if n_pad != n:
        out = out[:n]
    return out.reshape(orig_shape)


def multifusion_ref(weights, out_list):
    s = jax.nn.softmax(weights)
    return (out_list[0] * s[0] + out_list[1] * s[1]
            + out_list[2] * s[2] + out_list[3] * s[3])


if __name__ == "__main__":
    key = jax.random.PRNGKey(0)
    k_w, k0, k1, k2, k3 = jax.random.split(key, 5)

    # Deterministic "uniform(0,1)" init of the 4 fusion scalars
    # (weight_s, weight_m, weight_l, weight_l0), concatenated to shape (4,).
    weights = jax.random.uniform(k_w, (4,), dtype=jnp.float32, minval=0.0, maxval=1.0)

    # Small NCHW feature maps consistent with the forward pass.
    shape = (2, 4, 16, 16)
    x0 = jax.random.normal(k0, shape, dtype=jnp.float32)
    x1 = jax.random.normal(k1, shape, dtype=jnp.float32)
    x2 = jax.random.normal(k2, shape, dtype=jnp.float32)
    x3 = jax.random.normal(k3, shape, dtype=jnp.float32)

    out = multifusion(weights, [x0, x1, x2, x3])
    out = jax.block_until_ready(out)

    ref = multifusion_ref(weights, [x0, x1, x2, x3])
    assert out.shape == shape
    assert jnp.allclose(out, ref, atol=1e-5, rtol=1e-5)

    print("KERNEL_OK")
</pallas_src>

<mosaic_0001>
module attributes {stable_mosaic.version = 11 : i64} {
  func.func @_multifusion_kernel(%arg0: i32, %arg1: memref<4xf32, #tpu.memory_space<smem>>, %arg2: memref<1x2048xf32, #tpu.memory_space<vmem>>, %arg3: memref<1x2048xf32, #tpu.memory_space<vmem>>, %arg4: memref<1x2048xf32, #tpu.memory_space<vmem>>, %arg5: memref<1x2048xf32, #tpu.memory_space<vmem>>, %arg6: memref<1x2048xf32, #tpu.memory_space<vmem>>) attributes {dimension_semantics = [#tpu.dimension_semantics<parallel>], iteration_bounds = array<i64: 1>, scalar_prefetch = 0 : i64, scratch_operands = 0 : i64, tpu.core_type = #tpu.core_type<tc>, window_params = [{transform_indices = @transform_0, window_bounds = array<i64: 4>}, {transform_indices = @transform_1, window_bounds = array<i64: 1, 2048>}, {transform_indices = @transform_2, window_bounds = array<i64: 1, 2048>}, {transform_indices = @transform_3, window_bounds = array<i64: 1, 2048>}, {transform_indices = @transform_4, window_bounds = array<i64: 1, 2048>}, {transform_indices = @transform_5, window_bounds = array<i64: 1, 2048>}]} {
    %c0 = arith.constant 0 : index
    %0 = memref.load %arg1[%c0] : memref<4xf32, #tpu.memory_space<smem>>
    %c1 = arith.constant 1 : index
    %1 = memref.load %arg1[%c1] : memref<4xf32, #tpu.memory_space<smem>>
    %c2 = arith.constant 2 : index
    %2 = memref.load %arg1[%c2] : memref<4xf32, #tpu.memory_space<smem>>
    %c3 = arith.constant 3 : index
    %3 = memref.load %arg1[%c3] : memref<4xf32, #tpu.memory_space<smem>>
    %4 = arith.maximumf %0, %1 : f32
    %5 = arith.maximumf %2, %3 : f32
    %6 = arith.maximumf %4, %5 : f32
    %7 = arith.subf %0, %6 : f32
    %8 = math.exp %7 : f32
    %9 = arith.subf %1, %6 : f32
    %10 = math.exp %9 : f32
    %11 = arith.subf %2, %6 : f32
    %12 = math.exp %11 : f32
    %13 = arith.subf %3, %6 : f32
    %14 = math.exp %13 : f32
    %15 = arith.addf %8, %10 : f32
    %16 = arith.addf %15, %12 : f32
    %17 = arith.addf %16, %14 : f32
    %cst = arith.constant 1.000000e+00 : f32
    %18 = arith.divf %cst, %17 : f32
    %19 = arith.mulf %8, %18 : f32
    %20 = arith.mulf %10, %18 : f32
    %21 = arith.mulf %12, %18 : f32
    %22 = arith.mulf %14, %18 : f32
    %c0_0 = arith.constant 0 : index
    %c0_1 = arith.constant 0 : index
    %23 = vector.load %arg2[%c0_0, %c0_1] : memref<1x2048xf32, #tpu.memory_space<vmem>>, vector<1x2048xf32>
    %c0_2 = arith.constant 0 : index
    %c0_3 = arith.constant 0 : index
    %24 = vector.load %arg3[%c0_2, %c0_3] : memref<1x2048xf32, #tpu.memory_space<vmem>>, vector<1x2048xf32>
    %c0_4 = arith.constant 0 : index
    %c0_5 = arith.constant 0 : index
    %25 = vector.load %arg4[%c0_4, %c0_5] : memref<1x2048xf32, #tpu.memory_space<vmem>>, vector<1x2048xf32>
    %c0_6 = arith.constant 0 : index
    %c0_7 = arith.constant 0 : index
    %26 = vector.load %arg5[%c0_6, %c0_7] : memref<1x2048xf32, #tpu.memory_space<vmem>>, vector<1x2048xf32>
    %27 = vector.broadcast %19 : f32 to vector<1x2048xf32>
    %28 = arith.mulf %23, %27 : vector<1x2048xf32>
    %29 = vector.broadcast %20 : f32 to vector<1x2048xf32>
    %30 = arith.mulf %24, %29 : vector<1x2048xf32>
    %31 = arith.addf %28, %30 : vector<1x2048xf32>
    %32 = vector.broadcast %21 : f32 to vector<1x2048xf32>
    %33 = arith.mulf %25, %32 : vector<1x2048xf32>
    %34 = arith.addf %31, %33 : vector<1x2048xf32>
    %35 = vector.broadcast %22 : f32 to vector<1x2048xf32>
    %36 = arith.mulf %26, %35 : vector<1x2048xf32>
    %37 = arith.addf %34, %36 : vector<1x2048xf32>
    %c0_8 = arith.constant 0 : index
    %c0_9 = arith.constant 0 : index
    %38 = vector.load %arg6[%c0_8, %c0_9] : memref<1x2048xf32, #tpu.memory_space<vmem>>, vector<1x2048xf32>
    tpu.vector_store %arg6[%c0_8, %c0_9], %37 {strides = array<i32>} : memref<1x2048xf32, #tpu.memory_space<vmem>>, vector<1x2048xf32>,
    return
  }
  func.func @transform_0(%arg0: i32) -> i32 {
    %c0_i32 = arith.constant 0 : i32
    %c0_i32_0 = arith.constant 0 : i32
    return %c0_i32 : i32
  }
  func.func @transform_1(%arg0: i32) -> (i32, i32) {
    %c0_i32 = arith.constant 0 : i32
    %c0_i32_0 = arith.constant 0 : i32
    return %arg0, %c0_i32 : i32, i32
  }
  func.func @transform_2(%arg0: i32) -> (i32, i32) {
    %c0_i32 = arith.constant 0 : i32
    %c0_i32_0 = arith.constant 0 : i32
    return %arg0, %c0_i32 : i32, i32
  }
  func.func @transform_3(%arg0: i32) -> (i32, i32) {
    %c0_i32 = arith.constant 0 : i32
    %c0_i32_0 = arith.constant 0 : i32
    return %arg0, %c0_i32 : i32, i32
  }
  func.func @transform_4(%arg0: i32) -> (i32, i32) {
    %c0_i32 = arith.constant 0 : i32
    %c0_i32_0 = arith.constant 0 : i32
    return %arg0, %c0_i32 : i32, i32
  }
  func.func @transform_5(%arg0: i32) -> (i32, i32) {
    %c0_i32 = arith.constant 0 : i32
    %c0_i32_0 = arith.constant 0 : i32
    return %arg0, %c0_i32 : i32, i32
  }
}

</mosaic_0001>

<llo_original>
// kernel: tpu_custom_call.1
$region0: #{tpu_custom_call.1}
  #allocation0 [shape = 'u32[]', space=smem, size = 0x4, offset = 0x4, fixed_abs, tag = 'smem constant byte address 0x4 - core index']
  #allocation1 [shape = 'u32[144,128]{1,0:T(1,128)}', space=vmem, size = 0x12000, scoped, tag = 'internal scratch']
  %s0 = inlined_call_operand.hbm [shape: f32[4], index: 0, kind: input, shape index: {}]
  %s1 = inlined_call_operand.hbm [shape: f32[1,2048], index: 1, kind: input, shape index: {}]
  %s2 = inlined_call_operand.hbm [shape: f32[1,2048], index: 2, kind: input, shape index: {}]
  %s3 = inlined_call_operand.hbm [shape: f32[1,2048], index: 3, kind: input, shape index: {}]
  %s4 = inlined_call_operand.hbm [shape: f32[1,2048], index: 4, kind: input, shape index: {}]
  %s5 = inlined_call_operand.hbm [shape: f32[1,2048], index: 5, kind: output, shape index: {}]
  %s6 = sld [smem:[#allocation0]]
  $region50: #{tpu_custom_call.1} parent=0
    _
  %s8 = ssub.s32 1, %s6
  %s9 = scalar_select 0, %s8, %s6
  $region1: #{tpu_custom_call.1} parent=0
    #allocation2 [shape = 'u8[512]{0}', space=smem, size = 0x200, scoped, tag = 'input window, operand 0, single buffered']
    #allocation3 [shape = 's32[1]{0}', space=sflag, size = 0x4, scoped, tag = 'scoped memory for tpu_custom_call.1']
    #allocation4 [shape = 's32[1]{0}', space=sflag, size = 0x4, scoped, tag = 'scoped memory for tpu_custom_call.1']
    #allocation5 [shape = 's32[1]{0}', space=sflag, size = 0x4, scoped, tag = 'scoped memory for tpu_custom_call.1']
    #allocation6 [shape = 'u8[8192]{0}', space=vmem, size = 0x2000, scoped, tag = 'input window, operand 1, single buffered']
    #allocation7 [shape = 'u8[8192]{0}', space=vmem, size = 0x2000, scoped, tag = 'input window, operand 2, single buffered']
    #allocation8 [shape = 's32[1]{0}', space=sflag, size = 0x4, scoped, tag = 'scoped memory for tpu_custom_call.1']
    #allocation9 [shape = 'u8[8192]{0}', space=vmem, size = 0x2000, scoped, tag = 'input window, operand 3, single buffered']
    #allocation10 [shape = 'u8[8192]{0}', space=vmem, size = 0x2000, scoped, tag = 'input window, operand 4, single buffered']
    #allocation11 [shape = 's32[1]{0}', space=sflag, size = 0x4, scoped, tag = 'scoped memory for tpu_custom_call.1']
    #allocation12 [shape = 'u8[8192]{0}', space=vmem, size = 0x2000, scoped, tag = 'output window, operand 0, single buffered']
    %10 = vsyncpa [#allocation5], 0
    %11 = vsyncpa [#allocation3], 0
    %12 = vsyncpa [#allocation8], 0
    %13 = vsyncpa [#allocation11], 0
    %14 = vsyncpa [#allocation4], 0
    // Predicated region
    $region2: #{tpu_custom_call.1} parent=1 // pred_check
      _
    $region3: #{tpu_custom_call.1} parent=1 // pred_check_branch
      %16 = sbr.rel (0) target = $region5
    $region4: #{tpu_custom_call.1} parent=1 // pred_region
      %s18 = ssub.s32 16, 16
      %19 = vsyncadd [#allocation5], %s18
      %22 = dma.hbm_to_smem %s0, 16, [#allocation2], [#allocation5]
    $region5: #{tpu_custom_call.1} parent=1 // pred_fallthru
      _
    // Predicated region
    $region6: #{tpu_custom_call.1} parent=1 // pred_check
      _
    $region7: #{tpu_custom_call.1} parent=1 // pred_check_branch
      %24 = sbr.rel (0) target = $region9
    $region8: #{tpu_custom_call.1} parent=1 // pred_region
      %s26 = ssub.s32 256, 256
      %27 = vsyncadd [#allocation3], %s26
      %s29 = sshll.u32 [#allocation6], 4
      %s30 = int_to_ptr.vmem [resolvable:$true] %s29
      %32 = dma.hbm_to_vmem [thread:$0]  %s1, 256, %s30, [#allocation3]
    $region9: #{tpu_custom_call.1} parent=1 // pred_fallthru
      _
    // Predicated region
    $region10: #{tpu_custom_call.1} parent=1 // pred_check
      _
    $region11: #{tpu_custom_call.1} parent=1 // pred_check_branch
      %34 = sbr.rel (0) target = $region13
    $region12: #{tpu_custom_call.1} parent=1 // pred_region
      %s36 = ssub.s32 256, 256
      %37 = vsyncadd [#allocation8], %s36
      %s39 = sshll.u32 [#allocation7], 4
      %s40 = int_to_ptr.vmem [resolvable:$true] %s39
      %42 = dma.hbm_to_vmem [thread:$0]  %s2, 256, %s40, [#allocation8]
    $region13: #{tpu_custom_call.1} parent=1 // pred_fallthru
      _
    // Predicated region
    $region14: #{tpu_custom_call.1} parent=1 // pred_check
      _
    $region15: #{tpu_custom_call.1} parent=1 // pred_check_branch
      %44 = sbr.rel (0) target = $region17
    $region16: #{tpu_custom_call.1} parent=1 // pred_region
      %s46 = ssub.s32 256, 256
      %47 = vsyncadd [#allocation8], %s46
      %s49 = sshll.u32 [#allocation9], 4
      %s50 = int_to_ptr.vmem [resolvable:$true] %s49
      %52 = dma.hbm_to_vmem [thread:$0]  %s3, 256, %s50, [#allocation8]
    $region17: #{tpu_custom_call.1} parent=1 // pred_fallthru
      _
    // Predicated region
    $region18: #{tpu_custom_call.1} parent=1 // pred_check
      _
    $region19: #{tpu_custom_call.1} parent=1 // pred_check_branch
      %54 = sbr.rel (0) target = $region21
    $region20: #{tpu_custom_call.1} parent=1 // pred_region
      %s56 = ssub.s32 256, 256
      %57 = vsyncadd [#allocation11], %s56
      %s59 = sshll.u32 [#allocation10], 4
      %s60 = int_to_ptr.vmem [resolvable:$true] %s59
      %62 = dma.hbm_to_vmem [thread:$0]  %s4, 256, %s60, [#allocation11]
    $region21: #{tpu_custom_call.1} parent=1 // pred_fallthru
      _
    // Predicated region
    $region22: #{tpu_custom_call.1} parent=1 // pred_check
      _
    $region23: #{tpu_custom_call.1} parent=1 // pred_check_branch
      %64 = sbr.rel (0) target = $region25
    $region24: #{tpu_custom_call.1} parent=1 // pred_region
      %65 = dma.done [#allocation5], 16
    $region25: #{tpu_custom_call.1} parent=1 // pred_fallthru
      _
    // Predicated region
    $region26: #{tpu_custom_call.1} parent=1 // pred_check
      _
    $region27: #{tpu_custom_call.1} parent=1 // pred_check_branch
      %67 = sbr.rel (0) target = $region29
    $region28: #{tpu_custom_call.1} parent=1 // pred_region
      %68 = dma.done [#allocation3], 256
    $region29: #{tpu_custom_call.1} parent=1 // pred_fallthru
      _
    // Predicated region
    $region30: #{tpu_custom_call.1} parent=1 // pred_check
      _
    $region31: #{tpu_custom_call.1} parent=1 // pred_check_branch
      %70 = sbr.rel (0) target = $region33
    $region32: #{tpu_custom_call.1} parent=1 // pred_region
      %71 = dma.done [#allocation8], 256
    $region33: #{tpu_custom_call.1} parent=1 // pred_fallthru
      _
    // Predicated region
    $region34: #{tpu_custom_call.1} parent=1 // pred_check
      _
    $region35: #{tpu_custom_call.1} parent=1 // pred_check_branch
      %73 = sbr.rel (0) target = $region37
    $region36: #{tpu_custom_call.1} parent=1 // pred_region
      %74 = dma.done [#allocation8], 256
    $region37: #{tpu_custom_call.1} parent=1 // pred_fallthru
      _
    // Predicated region
    $region38: #{tpu_custom_call.1} parent=1 // pred_check
      _
    $region39: #{tpu_custom_call.1} parent=1 // pred_check_branch
      %76 = sbr.rel (0) target = $region41
    $region40: #{tpu_custom_call.1} parent=1 // pred_region
      %77 = dma.done [#allocation11], 256
    $region41: #{tpu_custom_call.1} parent=1 // pred_fallthru
      _
    %78 = sfence
    %s79 = sld [smem:[#allocation2]]
    %s80 = sld [smem:[#allocation2 + $0x1]]
    %s81 = sld [smem:[#allocation2 + $0x2]]
    %s82 = sld [smem:[#allocation2 + $0x3]]
    %s83 = smax.f32 %s79, %s80
    %s84 = smax.f32 %s81, %s82
    %s85 = smax.f32 %s83, %s84
    %s86 = ssub.f32 %s79, %s85
    %v87 = vstv %s86
    %v88 = vmul.f32 %v87, 1.442695
    %v89 = vpow.pop %v88
    %s90 = vtos %v89
    %s91 = ssub.f32 %s80, %s85
    %v92 = vstv %s91
    %v93 = vmul.f32 %v92, 1.442695
    %v94 = vpow.pop %v93
    %s95 = vtos %v94
    %s96 = ssub.f32 %s81, %s85
    %v97 = vstv %s96
    %v98 = vmul.f32 %v97, 1.442695
    %v99 = vpow.pop %v98
    %s100 = vtos %v99
    %s101 = ssub.f32 %s82, %s85
    %v102 = vstv %s101
    %v103 = vmul.f32 %v102, 1.442695
    %v104 = vpow.pop %v103
    %s105 = vtos %v104
    %s106 = sadd.f32 %s90, %s95
    %s107 = sadd.f32 %s106, %s100
    %s108 = sadd.f32 %s107, %s105
    %v109 = vstv %s108
    %v110 = vrcp.pop %v109
    %s111 = vtos %v110
    %s112 = smul.f32 %s90, %s111
    %s113 = smul.f32 %s95, %s111
    %s114 = smul.f32 %s100, %s111
    %s115 = smul.f32 %s105, %s111
    %v116 = vld [vmem:[#allocation6] sm:$0xff]
    %v117 = vld [vmem:[#allocation6 + $0x8] sm:$0xff]
    %v118 = vld [vmem:[#allocation7] sm:$0xff]
    %v119 = vld [vmem:[#allocation7 + $0x8] sm:$0xff]
    %v120 = vld [vmem:[#allocation9] sm:$0xff]
    %v121 = vld [vmem:[#allocation9 + $0x8] sm:$0xff]
    %v122 = vld [vmem:[#allocation10] sm:$0xff]
    %v123 = vld [vmem:[#allocation10 + $0x8] sm:$0xff]
    %v124 = vstv %s112
    %v125 = vmul.f32 %v116, %v124
    %v126 = vmul.f32 %v117, %v124
    %v127 = vstv %s113
    %v128 = vmul.f32 %v118, %v127
    %v129 = vmul.f32 %v119, %v127
    %v130 = vadd.f32 %v125, %v128
    %v131 = vadd.f32 %v126, %v129
    %v132 = vstv %s114
    %v133 = vmul.f32 %v120, %v132
    %v134 = vmul.f32 %v121, %v132
    %v135 = vadd.f32 %v130, %v133
    %v136 = vadd.f32 %v131, %v134
    %v137 = vstv %s115
    %v138 = vmul.f32 %v122, %v137
    %v139 = vmul.f32 %v123, %v137
    %v140 = vadd.f32 %v135, %v138
    %v141 = vadd.f32 %v136, %v139
    %142 = vst [vmem:[#allocation12] sm:$0xff] %v140
    %143 = vst [vmem:[#allocation12 + $0x8] sm:$0xff] %v141
    // Predicated region
    $region42: #{tpu_custom_call.1} parent=1 // pred_check
      _
    $region43: #{tpu_custom_call.1} parent=1 // pred_check_branch
      %145 = sbr.rel (0) target = $region45
    $region44: #{tpu_custom_call.1} parent=1 // pred_region
      %s147 = ssub.s32 256, 256
      %148 = vsyncadd [#allocation4], %s147
      %s150 = sshll.u32 [#allocation12], 4
      %s151 = int_to_ptr.vmem [resolvable:$true] %s150
      %153 = dma.vmem_to_hbm [thread:$0]  %s151, 256, %s5, [#allocation4]
    $region45: #{tpu_custom_call.1} parent=1 // pred_fallthru
      _
    // Predicated region
    $region46: #{tpu_custom_call.1} parent=1 // pred_check
      _
    $region47: #{tpu_custom_call.1} parent=1 // pred_check_branch
      %155 = sbr.rel (0) target = $region49
    $region48: #{tpu_custom_call.1} parent=1 // pred_region
      %156 = dma.done [#allocation4], 256
    $region49: #{tpu_custom_call.1} parent=1 // pred_fallthru
      _
    %157 = vsyncpa [#allocation3], 1
    %158 = vsyncpa [#allocation8], 1
    %159 = vsyncpa [#allocation11], 1
    %160 = vsyncpa [#allocation4], 1
    %161 = vsyncpa [#allocation5], 1

</llo_original>
